<compile_context>
chip_gen: v6e
topology: v6e:2x2x1
jax: 0.10.0
libtpu: 0.0.40
codegen_flags: <defaults>
</compile_context>

<pallas_src>
import jax
import jax.numpy as jnp
import numpy as np
from jax import lax
from jax.experimental import pallas as pl
from jax.experimental.pallas import tpu as pltpu

# ----- small hparams (mirroring the PyTorch module's hparams) -----
TOKEN_NUM = 10                       # hparams.token_num
TOKEN_EMBEDDING_SIZE = 32            # hparams.token_embedding_size (num_units E)
NUM_HEADS = 4                        # hparams.num_heads
REF_ENC_GRU_SIZE = TOKEN_EMBEDDING_SIZE // 2   # hparams.ref_enc_gru_size = d_q = 16
D_K = TOKEN_EMBEDDING_SIZE // NUM_HEADS        # key_dim (token embedding per head) = 8
HEAD_DIM = TOKEN_EMBEDDING_SIZE // NUM_HEADS   # num_units // num_heads = 8


# ------------------------------------------------------------------
# Fused Pallas kernel: tanh(embed) -> Q/K/V projections -> per-head
# scaled-dot-product softmax attention -> head concat.
# ------------------------------------------------------------------
def stl_kernel(x_ref, embed_ref, wq_ref, wk_ref, wv_ref, o_ref):
    # x:     (N, d_q)        query (T_q == 1 squeezed away)
    # embed: (T, d_k)        style tokens
    # wq:    (d_q, E), wk/wv: (d_k, E)   (already transposed: y = x @ W)
    # o:     (N, E)
    x = x_ref[...]
    keys = jnp.tanh(embed_ref[...])                                   # (T, d_k)

    q = jnp.dot(x, wq_ref[...], preferred_element_type=jnp.float32)   # (N, E)
    k = jnp.dot(keys, wk_ref[...], preferred_element_type=jnp.float32)  # (T, E)
    v = jnp.dot(keys, wv_ref[...], preferred_element_type=jnp.float32)  # (T, E)

    scale = 1.0 / (D_K ** 0.5)
    outs = []
    for h in range(NUM_HEADS):                       # static unroll, tiny head count
        lo, hi = h * HEAD_DIM, (h + 1) * HEAD_DIM
        qh = q[:, lo:hi]                             # (N, D)
        kh = k[:, lo:hi]                             # (T, D)
        vh = v[:, lo:hi]                             # (T, D)
        # scores = qh @ kh^T without an explicit transpose
        s = lax.dot_general(qh, kh, (((1,), (1,)), ((), ())),
                            preferred_element_type=jnp.float32) * scale   # (N, T)
        s = s - jnp.max(s, axis=-1, keepdims=True)
        p = jnp.exp(s)
        p = p / jnp.sum(p, axis=-1, keepdims=True)
        outs.append(jnp.dot(p, vh, preferred_element_type=jnp.float32))   # (N, D)

    # one full-width (lane-dense) store instead of NUM_HEADS partial stores
    o_ref[...] = jnp.concatenate(outs, axis=-1)


# ------------------------------------------------------------------
# Wrapper
# ------------------------------------------------------------------
def stl_forward(inputs, params):
    # inputs: [N, token_embedding_size // 2]  (== [N, d_q])
    N, d_q = inputs.shape
    E = TOKEN_EMBEDDING_SIZE
    embed, wq, wk, wv = params["embed"], params["wq"], params["wk"], params["wv"]

    out = pl.pallas_call(
        stl_kernel,
        grid=(1,),
        in_specs=[
            pl.BlockSpec((N, d_q), lambda i: (0, 0)),
            pl.BlockSpec(embed.shape, lambda i: (0, 0)),
            pl.BlockSpec(wq.shape, lambda i: (0, 0)),
            pl.BlockSpec(wk.shape, lambda i: (0, 0)),
            pl.BlockSpec(wv.shape, lambda i: (0, 0)),
        ],
        out_specs=pl.BlockSpec((N, E), lambda i: (0, 0)),
        out_shape=jax.ShapeDtypeStruct((N, E), jnp.float32),
        compiler_params=pltpu.CompilerParams(dimension_semantics=("arbitrary",)),
    )(inputs, embed, wq, wk, wv)

    # PyTorch returns [N, T_q, num_units] with T_q == 1
    return out.reshape(N, 1, E)


# ------------------------------------------------------------------
# Parameter setup (matches nn.Linear(bias=False): y = x @ W.T; we store W.T)
# ------------------------------------------------------------------
def init_params(key):
    k1, k2, k3, k4 = jax.random.split(key, 4)
    # init.normal_(embed, mean=0, std=0.5)
    embed = 0.5 * jax.random.normal(k1, (TOKEN_NUM, D_K), jnp.float32)
    wq = 0.1 * jax.random.normal(k2, (TOKEN_EMBEDDING_SIZE, REF_ENC_GRU_SIZE), jnp.float32)
    wk = 0.1 * jax.random.normal(k3, (TOKEN_EMBEDDING_SIZE, D_K), jnp.float32)
    wv = 0.1 * jax.random.normal(k4, (TOKEN_EMBEDDING_SIZE, D_K), jnp.float32)
    return {"embed": embed, "wq": wq.T, "wk": wk.T, "wv": wv.T}


# ------------------------------------------------------------------
# Pure-JAX reference (same params / same math) for validation
# ------------------------------------------------------------------
def ref_forward(inputs, params):
    P = lax.Precision.HIGHEST
    N = inputs.shape[0]
    keys = jnp.tanh(params["embed"])                       # expand over batch is a broadcast
    q = jnp.dot(inputs, params["wq"], precision=P)         # (N, E)
    k = jnp.dot(keys, params["wk"], precision=P)           # (T, E)
    v = jnp.dot(keys, params["wv"], precision=P)           # (T, E)
    outs = []
    for h in range(NUM_HEADS):
        lo, hi = h * HEAD_DIM, (h + 1) * HEAD_DIM
        s = jnp.dot(q[:, lo:hi], k[:, lo:hi].T, precision=P) / (D_K ** 0.5)
        p = jax.nn.softmax(s, axis=-1)
        outs.append(jnp.dot(p, v[:, lo:hi], precision=P))
    return jnp.concatenate(outs, axis=-1).reshape(N, 1, TOKEN_EMBEDDING_SIZE)


if __name__ == "__main__":
    key = jax.random.PRNGKey(0)
    pkey, xkey = jax.random.split(key)
    params = init_params(pkey)
    # inputs: [N, token_embedding_size // 2] = [2, 16]
    x = jax.random.normal(xkey, (2, REF_ENC_GRU_SIZE), jnp.float32)

    out = stl_forward(x, params)
    out = jax.block_until_ready(out)
    assert out.shape == (2, 1, TOKEN_EMBEDDING_SIZE)

    ref = ref_forward(x, params)
    np.testing.assert_allclose(np.asarray(out), np.asarray(ref), rtol=1e-2, atol=1e-2)
    print("KERNEL_OK")
</pallas_src>

<mosaic_0001>
module attributes {stable_mosaic.version = 11 : i64} {
  func.func @stl_kernel(%arg0: i32, %arg1: memref<2x16xf32, #tpu.memory_space<vmem>>, %arg2: memref<10x8xf32, #tpu.memory_space<vmem>>, %arg3: memref<16x32xf32, #tpu.memory_space<vmem>>, %arg4: memref<8x32xf32, #tpu.memory_space<vmem>>, %arg5: memref<8x32xf32, #tpu.memory_space<vmem>>, %arg6: memref<2x32xf32, #tpu.memory_space<vmem>>) attributes {dimension_semantics = [#tpu.dimension_semantics<arbitrary>], iteration_bounds = array<i64: 1>, scalar_prefetch = 0 : i64, scratch_operands = 0 : i64, tpu.core_type = #tpu.core_type<tc>, window_params = [{pipeline_mode = #tpu.pipeline_mode<synchronous>, transform_indices = @transform_0, window_bounds = array<i64: 2, 16>}, {pipeline_mode = #tpu.pipeline_mode<synchronous>, transform_indices = @transform_1, window_bounds = array<i64: 10, 8>}, {pipeline_mode = #tpu.pipeline_mode<synchronous>, transform_indices = @transform_2, window_bounds = array<i64: 16, 32>}, {pipeline_mode = #tpu.pipeline_mode<synchronous>, transform_indices = @transform_3, window_bounds = array<i64: 8, 32>}, {pipeline_mode = #tpu.pipeline_mode<synchronous>, transform_indices = @transform_4, window_bounds = array<i64: 8, 32>}, {pipeline_mode = #tpu.pipeline_mode<synchronous>, transform_indices = @transform_5, window_bounds = array<i64: 2, 32>}]} {
    %c0 = arith.constant 0 : index
    %c0_0 = arith.constant 0 : index
    %0 = vector.load %arg1[%c0, %c0_0] : memref<2x16xf32, #tpu.memory_space<vmem>>, vector<2x16xf32>
    %c0_1 = arith.constant 0 : index
    %c0_2 = arith.constant 0 : index
    %1 = vector.load %arg2[%c0_1, %c0_2] : memref<10x8xf32, #tpu.memory_space<vmem>>, vector<10x8xf32>
    %2 = math.tanh %1 : vector<10x8xf32>
    %c0_3 = arith.constant 0 : index
    %c0_4 = arith.constant 0 : index
    %3 = vector.load %arg3[%c0_3, %c0_4] : memref<16x32xf32, #tpu.memory_space<vmem>>, vector<16x32xf32>
    %cst = arith.constant dense<0.000000e+00> : vector<2x32xf32>
    %4 = tpu.matmul %0, %3, %cst {dimension_numbers = #tpu.dot_dimension_numbers<[1], [0], [0], [1], [0, 0, 1, 1], [], []>} : vector<2x16xf32>, vector<16x32xf32>, vector<2x32xf32> -> vector<2x32xf32>
    %c0_5 = arith.constant 0 : index
    %c0_6 = arith.constant 0 : index
    %5 = vector.load %arg4[%c0_5, %c0_6] : memref<8x32xf32, #tpu.memory_space<vmem>>, vector<8x32xf32>
    %cst_7 = arith.constant dense<0.000000e+00> : vector<10x32xf32>
    %6 = tpu.matmul %2, %5, %cst_7 {dimension_numbers = #tpu.dot_dimension_numbers<[1], [0], [0], [1], [0, 0, 1, 1], [], []>} : vector<10x8xf32>, vector<8x32xf32>, vector<10x32xf32> -> vector<10x32xf32>
    %c0_8 = arith.constant 0 : index
    %c0_9 = arith.constant 0 : index
    %7 = vector.load %arg5[%c0_8, %c0_9] : memref<8x32xf32, #tpu.memory_space<vmem>>, vector<8x32xf32>
    %cst_10 = arith.constant dense<0.000000e+00> : vector<10x32xf32>
    %8 = tpu.matmul %2, %7, %cst_10 {dimension_numbers = #tpu.dot_dimension_numbers<[1], [0], [0], [1], [0, 0, 1, 1], [], []>} : vector<10x8xf32>, vector<8x32xf32>, vector<10x32xf32> -> vector<10x32xf32>
    %9 = vector.extract_strided_slice %4 {offsets = [0, 0], sizes = [2, 8], strides = [1, 1]} : vector<2x32xf32> to vector<2x8xf32>
    %10 = vector.extract_strided_slice %6 {offsets = [0, 0], sizes = [10, 8], strides = [1, 1]} : vector<10x32xf32> to vector<10x8xf32>
    %11 = vector.extract_strided_slice %8 {offsets = [0, 0], sizes = [10, 8], strides = [1, 1]} : vector<10x32xf32> to vector<10x8xf32>
    %cst_11 = arith.constant dense<0.000000e+00> : vector<2x10xf32>
    %12 = tpu.matmul %9, %10, %cst_11 {dimension_numbers = #tpu.dot_dimension_numbers<[1], [1], [0], [0], [0, 0, 1, 0], [], []>} : vector<2x8xf32>, vector<10x8xf32>, vector<2x10xf32> -> vector<2x10xf32>
    %cst_12 = arith.constant 0.353553385 : f32
    %13 = vector.broadcast %cst_12 : f32 to vector<2x10xf32>
    %14 = arith.mulf %12, %13 : vector<2x10xf32>
    %cst_13 = arith.constant dense<0xFF800000> : vector<2xf32>
    %15 = vector.multi_reduction <maximumf>, %14, %cst_13 [1] : vector<2x10xf32> to vector<2xf32>
    %16 = vector.shape_cast %15 : vector<2xf32> to vector<2x1xf32>
    %17 = vector.broadcast %16 : vector<2x1xf32> to vector<2x10xf32>
    %18 = arith.subf %14, %17 : vector<2x10xf32>
    %19 = math.exp %18 : vector<2x10xf32>
    %cst_14 = arith.constant dense<0.000000e+00> : vector<2xf32>
    %20 = vector.multi_reduction <add>, %19, %cst_14 [1] : vector<2x10xf32> to vector<2xf32>
    %21 = vector.shape_cast %20 : vector<2xf32> to vector<2x1xf32>
    %22 = vector.broadcast %21 : vector<2x1xf32> to vector<2x10xf32>
    %23 = arith.divf %19, %22 : vector<2x10xf32>
    %cst_15 = arith.constant dense<0.000000e+00> : vector<2x8xf32>
    %24 = tpu.matmul %23, %11, %cst_15 {dimension_numbers = #tpu.dot_dimension_numbers<[1], [0], [0], [1], [0, 0, 1, 1], [], []>} : vector<2x10xf32>, vector<10x8xf32>, vector<2x8xf32> -> vector<2x8xf32>
    %25 = vector.extract_strided_slice %4 {offsets = [0, 8], sizes = [2, 8], strides = [1, 1]} : vector<2x32xf32> to vector<2x8xf32>
    %26 = vector.extract_strided_slice %6 {offsets = [0, 8], sizes = [10, 8], strides = [1, 1]} : vector<10x32xf32> to vector<10x8xf32>
    %27 = vector.extract_strided_slice %8 {offsets = [0, 8], sizes = [10, 8], strides = [1, 1]} : vector<10x32xf32> to vector<10x8xf32>
    %cst_16 = arith.constant dense<0.000000e+00> : vector<2x10xf32>
    %28 = tpu.matmul %25, %26, %cst_16 {dimension_numbers = #tpu.dot_dimension_numbers<[1], [1], [0], [0], [0, 0, 1, 0], [], []>} : vector<2x8xf32>, vector<10x8xf32>, vector<2x10xf32> -> vector<2x10xf32>
    %cst_17 = arith.constant 0.353553385 : f32
    %29 = vector.broadcast %cst_17 : f32 to vector<2x10xf32>
    %30 = arith.mulf %28, %29 : vector<2x10xf32>
    %cst_18 = arith.constant dense<0xFF800000> : vector<2xf32>
    %31 = vector.multi_reduction <maximumf>, %30, %cst_18 [1] : vector<2x10xf32> to vector<2xf32>
    %32 = vector.shape_cast %31 : vector<2xf32> to vector<2x1xf32>
    %33 = vector.broadcast %32 : vector<2x1xf32> to vector<2x10xf32>
    %34 = arith.subf %30, %33 : vector<2x10xf32>
    %35 = math.exp %34 : vector<2x10xf32>
    %cst_19 = arith.constant dense<0.000000e+00> : vector<2xf32>
    %36 = vector.multi_reduction <add>, %35, %cst_19 [1] : vector<2x10xf32> to vector<2xf32>
    %37 = vector.shape_cast %36 : vector<2xf32> to vector<2x1xf32>
    %38 = vector.broadcast %37 : vector<2x1xf32> to vector<2x10xf32>
    %39 = arith.divf %35, %38 : vector<2x10xf32>
    %cst_20 = arith.constant dense<0.000000e+00> : vector<2x8xf32>
    %40 = tpu.matmul %39, %27, %cst_20 {dimension_numbers = #tpu.dot_dimension_numbers<[1], [0], [0], [1], [0, 0, 1, 1], [], []>} : vector<2x10xf32>, vector<10x8xf32>, vector<2x8xf32> -> vector<2x8xf32>
    %41 = vector.extract_strided_slice %4 {offsets = [0, 16], sizes = [2, 8], strides = [1, 1]} : vector<2x32xf32> to vector<2x8xf32>
    %42 = vector.extract_strided_slice %6 {offsets = [0, 16], sizes = [10, 8], strides = [1, 1]} : vector<10x32xf32> to vector<10x8xf32>
    %43 = vector.extract_strided_slice %8 {offsets = [0, 16], sizes = [10, 8], strides = [1, 1]} : vector<10x32xf32> to vector<10x8xf32>
    %cst_21 = arith.constant dense<0.000000e+00> : vector<2x10xf32>
    %44 = tpu.matmul %41, %42, %cst_21 {dimension_numbers = #tpu.dot_dimension_numbers<[1], [1], [0], [0], [0, 0, 1, 0], [], []>} : vector<2x8xf32>, vector<10x8xf32>, vector<2x10xf32> -> vector<2x10xf32>
    %cst_22 = arith.constant 0.353553385 : f32
    %45 = vector.broadcast %cst_22 : f32 to vector<2x10xf32>
    %46 = arith.mulf %44, %45 : vector<2x10xf32>
    %cst_23 = arith.constant dense<0xFF800000> : vector<2xf32>
    %47 = vector.multi_reduction <maximumf>, %46, %cst_23 [1] : vector<2x10xf32> to vector<2xf32>
    %48 = vector.shape_cast %47 : vector<2xf32> to vector<2x1xf32>
    %49 = vector.broadcast %48 : vector<2x1xf32> to vector<2x10xf32>
    %50 = arith.subf %46, %49 : vector<2x10xf32>
    %51 = math.exp %50 : vector<2x10xf32>
    %cst_24 = arith.constant dense<0.000000e+00> : vector<2xf32>
    %52 = vector.multi_reduction <add>, %51, %cst_24 [1] : vector<2x10xf32> to vector<2xf32>
    %53 = vector.shape_cast %52 : vector<2xf32> to vector<2x1xf32>
    %54 = vector.broadcast %53 : vector<2x1xf32> to vector<2x10xf32>
    %55 = arith.divf %51, %54 : vector<2x10xf32>
    %cst_25 = arith.constant dense<0.000000e+00> : vector<2x8xf32>
    %56 = tpu.matmul %55, %43, %cst_25 {dimension_numbers = #tpu.dot_dimension_numbers<[1], [0], [0], [1], [0, 0, 1, 1], [], []>} : vector<2x10xf32>, vector<10x8xf32>, vector<2x8xf32> -> vector<2x8xf32>
    %57 = vector.extract_strided_slice %4 {offsets = [0, 24], sizes = [2, 8], strides = [1, 1]} : vector<2x32xf32> to vector<2x8xf32>
    %58 = vector.extract_strided_slice %6 {offsets = [0, 24], sizes = [10, 8], strides = [1, 1]} : vector<10x32xf32> to vector<10x8xf32>
    %59 = vector.extract_strided_slice %8 {offsets = [0, 24], sizes = [10, 8], strides = [1, 1]} : vector<10x32xf32> to vector<10x8xf32>
    %cst_26 = arith.constant dense<0.000000e+00> : vector<2x10xf32>
    %60 = tpu.matmul %57, %58, %cst_26 {dimension_numbers = #tpu.dot_dimension_numbers<[1], [1], [0], [0], [0, 0, 1, 0], [], []>} : vector<2x8xf32>, vector<10x8xf32>, vector<2x10xf32> -> vector<2x10xf32>
    %cst_27 = arith.constant 0.353553385 : f32
    %61 = vector.broadcast %cst_27 : f32 to vector<2x10xf32>
    %62 = arith.mulf %60, %61 : vector<2x10xf32>
    %cst_28 = arith.constant dense<0xFF800000> : vector<2xf32>
    %63 = vector.multi_reduction <maximumf>, %62, %cst_28 [1] : vector<2x10xf32> to vector<2xf32>
    %64 = vector.shape_cast %63 : vector<2xf32> to vector<2x1xf32>
    %65 = vector.broadcast %64 : vector<2x1xf32> to vector<2x10xf32>
    %66 = arith.subf %62, %65 : vector<2x10xf32>
    %67 = math.exp %66 : vector<2x10xf32>
    %cst_29 = arith.constant dense<0.000000e+00> : vector<2xf32>
    %68 = vector.multi_reduction <add>, %67, %cst_29 [1] : vector<2x10xf32> to vector<2xf32>
    %69 = vector.shape_cast %68 : vector<2xf32> to vector<2x1xf32>
    %70 = vector.broadcast %69 : vector<2x1xf32> to vector<2x10xf32>
    %71 = arith.divf %67, %70 : vector<2x10xf32>
    %cst_30 = arith.constant dense<0.000000e+00> : vector<2x8xf32>
    %72 = tpu.matmul %71, %59, %cst_30 {dimension_numbers = #tpu.dot_dimension_numbers<[1], [0], [0], [1], [0, 0, 1, 1], [], []>} : vector<2x10xf32>, vector<10x8xf32>, vector<2x8xf32> -> vector<2x8xf32>
    %73 = tpu.concatenate %24, %40, %56, %72 in 1 : vector<2x8xf32>, vector<2x8xf32>, vector<2x8xf32>, vector<2x8xf32> -> vector<2x32xf32>
    %c0_31 = arith.constant 0 : index
    %c0_32 = arith.constant 0 : index
    %74 = vector.load %arg6[%c0_31, %c0_32] : memref<2x32xf32, #tpu.memory_space<vmem>>, vector<2x32xf32>
    tpu.vector_store %arg6[%c0_31, %c0_32], %73 {strides = array<i32>} : memref<2x32xf32, #tpu.memory_space<vmem>>, vector<2x32xf32>,
    return
  }
  func.func @transform_0(%arg0: i32) -> (i32, i32) {
    %c0_i32 = arith.constant 0 : i32
    %c0_i32_0 = arith.constant 0 : i32
    %c0_i32_1 = arith.constant 0 : i32
    return %c0_i32, %c0_i32_0 : i32, i32
  }
  func.func @transform_1(%arg0: i32) -> (i32, i32) {
    %c0_i32 = arith.constant 0 : i32
    %c0_i32_0 = arith.constant 0 : i32
    %c0_i32_1 = arith.constant 0 : i32
    return %c0_i32, %c0_i32_0 : i32, i32
  }
  func.func @transform_2(%arg0: i32) -> (i32, i32) {
    %c0_i32 = arith.constant 0 : i32
    %c0_i32_0 = arith.constant 0 : i32
    %c0_i32_1 = arith.constant 0 : i32
    return %c0_i32, %c0_i32_0 : i32, i32
  }
  func.func @transform_3(%arg0: i32) -> (i32, i32) {
    %c0_i32 = arith.constant 0 : i32
    %c0_i32_0 = arith.constant 0 : i32
    %c0_i32_1 = arith.constant 0 : i32
    return %c0_i32, %c0_i32_0 : i32, i32
  }
  func.func @transform_4(%arg0: i32) -> (i32, i32) {
    %c0_i32 = arith.constant 0 : i32
    %c0_i32_0 = arith.constant 0 : i32
    %c0_i32_1 = arith.constant 0 : i32
    return %c0_i32, %c0_i32_0 : i32, i32
  }
  func.func @transform_5(%arg0: i32) -> (i32, i32) {
    %c0_i32 = arith.constant 0 : i32
    %c0_i32_0 = arith.constant 0 : i32
    %c0_i32_1 = arith.constant 0 : i32
    return %c0_i32, %c0_i32_0 : i32, i32
  }
}

</mosaic_0001>

<llo_original>
// kernel: tpu_custom_call.1
$region0: #{tpu_custom_call.1}
  #allocation0 [shape = 'u32[]', space=smem, size = 0x4, offset = 0x4, fixed_abs, tag = 'smem constant byte address 0x4 - core index']
  #allocation1 [shape = 'u32[144,128]{1,0:T(1,128)}', space=vmem, size = 0x12000, scoped, tag = 'internal scratch']
  %s0 = inlined_call_operand.vmem [shape: f32[2,16], index: 0, kind: input, shape index: {}]
  %s1 = inlined_call_operand.vmem [shape: f32[10,8], index: 1, kind: input, shape index: {}]
  %s2 = inlined_call_operand.vmem [shape: f32[16,32], index: 2, kind: input, shape index: {}]
  %s3 = inlined_call_operand.vmem [shape: f32[8,32], index: 3, kind: input, shape index: {}]
  %s4 = inlined_call_operand.hbm [shape: f32[8,32], index: 4, kind: input, shape index: {}]
  %s5 = inlined_call_operand.hbm [shape: f32[2,32], index: 5, kind: output, shape index: {}]
  %s6 = sld [smem:[#allocation0]]
  $region34: #{tpu_custom_call.1} parent=0
    _
  %s8 = ssub.s32 1, %s6
  %s9 = scalar_select 0, %s8, %s6
  $region1: #{tpu_custom_call.1} parent=0
    #allocation2 [shape = 'u8[4096]{0}', space=vmem, size = 0x1000, scoped, tag = 'input window, operand 4, single buffered']
    #allocation3 [shape = 's32[1]{0}', space=sflag, size = 0x4, scoped, tag = 'scoped memory for tpu_custom_call.1']
    #allocation4 [shape = 's32[1]{0}', space=sflag, size = 0x4, scoped, tag = 'scoped memory for tpu_custom_call.1']
    #allocation5 [shape = 'u8[1024]{0}', space=vmem, size = 0x400, scoped, tag = 'output window, operand 0, single buffered']
    %10 = vsyncpa [#allocation3], 0
    %11 = vsyncpa [#allocation4], 0
    // Predicated region
    $region2: #{tpu_custom_call.1} parent=1 // pred_check
      _
    $region3: #{tpu_custom_call.1} parent=1 // pred_check_branch
      %13 = sbr.rel (0) target = $region5
    $region4: #{tpu_custom_call.1} parent=1 // pred_region
      _
    $region5: #{tpu_custom_call.1} parent=1 // pred_fallthru
      _
    // Predicated region
    $region6: #{tpu_custom_call.1} parent=1 // pred_check
      _
    $region7: #{tpu_custom_call.1} parent=1 // pred_check_branch
      %15 = sbr.rel (0) target = $region9
    $region8: #{tpu_custom_call.1} parent=1 // pred_region
      _
    $region9: #{tpu_custom_call.1} parent=1 // pred_fallthru
      _
    // Predicated region
    $region10: #{tpu_custom_call.1} parent=1 // pred_check
      _
    $region11: #{tpu_custom_call.1} parent=1 // pred_check_branch
      %17 = sbr.rel (0) target = $region13
    $region12: #{tpu_custom_call.1} parent=1 // pred_region
      _
    $region13: #{tpu_custom_call.1} parent=1 // pred_fallthru
      _
    // Predicated region
    $region14: #{tpu_custom_call.1} parent=1 // pred_check
      _
    $region15: #{tpu_custom_call.1} parent=1 // pred_check_branch
      %19 = sbr.rel (0) target = $region17
    $region16: #{tpu_custom_call.1} parent=1 // pred_region
      _
    $region17: #{tpu_custom_call.1} parent=1 // pred_fallthru
      _
    // Predicated region
    $region18: #{tpu_custom_call.1} parent=1 // pred_check
      _
    $region19: #{tpu_custom_call.1} parent=1 // pred_check_branch
      %21 = sbr.rel (0) target = $region21
    $region20: #{tpu_custom_call.1} parent=1 // pred_region
      %s23 = ssub.s32 128, 128
      %24 = vsyncadd [#allocation3], %s23
      %s26 = sshll.u32 [#allocation2], 4
      %s27 = int_to_ptr.vmem [resolvable:$true] %s26
      %29 = dma.hbm_to_vmem [thread:$0]  %s4, 128, %s27, [#allocation3]
    $region21: #{tpu_custom_call.1} parent=1 // pred_fallthru
      _
    // Predicated region
    $region22: #{tpu_custom_call.1} parent=1 // pred_check
      _
    $region23: #{tpu_custom_call.1} parent=1 // pred_check_branch
      %31 = sbr.rel (0) target = $region25
    $region24: #{tpu_custom_call.1} parent=1 // pred_region
      %32 = dma.done [#allocation3], 128
    $region25: #{tpu_custom_call.1} parent=1 // pred_fallthru
      _
    %v33 = vld [vmem:[%s0] sm:$0x3]
    %v34 = vld [vmem:[%s1] sm:$0xff]
    %v35 = vld [vmem:[%s1 + $0x8] sm:$0x3]
    %v36 = vtanh.pop %v34
    %v37 = vtanh.pop %v35
    %v38 = vld [vmem:[%s2] sm:$0xff]
    %v39 = vld [vmem:[%s2 + $0x8] sm:$0xff]
    %vm40 = vcmask 130048
    %v42 = vsel %vm40, %v33, 0
    %44 = vmatprep.subr.mxu0 0.0
    %45 = vmatpush1.msra.mxu0 0.0
    %46 = vmatprep.subr.mxu0 0.0
    %47 = vmatpush1.msra.mxu0 0.0
    %48 = vmatprep.subr.mxu0 0.0
    %49 = vmatpush1.msra.mxu0 0.0
    %50 = vmatprep.subr.mxu0 0.0
    %51 = vmatpush1.msra.mxu0 0.0
    %52 = vmatprep.subr.mxu0 0.0
    %53 = vmatpush1.msra.mxu0 0.0
    %54 = vmatprep.subr.mxu0 0.0
    %55 = vmatpush1.msra.mxu0 0.0
    %56 = vmatprep.subr.mxu0 0.0
    %57 = vmatpush1.msra.mxu0 0.0
    %58 = vmatprep.subr.mxu0 0.0
    %59 = vmatpush1.msra.mxu0 0.0
    %60 = vmatprep.subr.mxu0 0.0
    %61 = vmatpush1.msra.mxu0 0.0
    %62 = vmatprep.subr.mxu0 0.0
    %63 = vmatpush1.msra.mxu0 0.0
    %64 = vmatprep.subr.mxu0 0.0
    %65 = vmatpush1.msra.mxu0 0.0
    %66 = vmatprep.subr.mxu0 0.0
    %67 = vmatpush1.msra.mxu0 0.0
    %68 = vmatprep.subr.mxu0 0.0
    %69 = vmatpush1.msra.mxu0 0.0
    %70 = vmatprep.subr.mxu0 0.0
    %71 = vmatpush1.msra.mxu0 0.0
    %72 = vmatprep.subr.mxu0 0.0
    %73 = vmatpush1.msra.mxu0 %v39
    %74 = vmatprep.subr.mxu0 0.0
    %75 = vmatpush1.msra.mxu0 %v38
    %76 = vmatprep.subr.mxu0 0.0
    %77 = vmatpush2.msra.mxu0 0.0
    %78 = vmatprep.subr.mxu0 0.0
    %79 = vmatpush2.msra.mxu0 0.0
    %80 = vmatprep.subr.mxu0 0.0
    %81 = vmatpush2.msra.mxu0 0.0
    %82 = vmatprep.subr.mxu0 0.0
    %83 = vmatpush2.msra.mxu0 0.0
    %84 = vmatprep.subr.mxu0 0.0
    %85 = vmatpush2.msra.mxu0 0.0
    %86 = vmatprep.subr.mxu0 0.0
    %87 = vmatpush2.msra.mxu0 0.0
    %88 = vmatprep.subr.mxu0 0.0
    %89 = vmatpush2.msra.mxu0 0.0
    %90 = vmatprep.subr.mxu0 0.0
    %91 = vmatpush2.msra.mxu0 0.0
    %92 = vmatprep.subr.mxu0 0.0
    %93 = vmatpush2.msra.mxu0 0.0
    %94 = vmatprep.subr.mxu0 0.0
    %95 = vmatpush2.msra.mxu0 0.0
    %96 = vmatprep.subr.mxu0 0.0
    %97 = vmatpush2.msra.mxu0 0.0
    %98 = vmatprep.subr.mxu0 0.0
    %99 = vmatpush2.msra.mxu0 0.0
    %100 = vmatprep.subr.mxu0 0.0
    %101 = vmatpush2.msra.mxu0 0.0
    %102 = vmatprep.subr.mxu0 0.0
    %103 = vmatpush2.msra.mxu0 0.0
    %104 = vmatprep.subr.mxu0 0.0
    %105 = vmatpush2.msra.mxu0 0.0
    %106 = vmatprep.subr.mxu0 0.0
    %107 = vmatpush2.msra.mxu0 0.0
    %108 = vmatprep.mubr.f32.mxu0 0.0
    %109 = vmatmul.mubr.f32.gmra.mxu0 %v42
    %v110 = vpop.f32.mrf.mxu0
    %v111 = vadd.f32 0.0, %v110
    %v112 = vpop.f32.mrf.mxu0
    %113 = vdwg.mxu0
    %v114 = vld [vmem:[%s3] sm:$0xff]
    %vm115 = vcmask 64512
    %v117 = vsel %vm115, %v36, 0
    %v120 = vsel %vm115, %v37, 0
    %122 = vmatprep.subr.mxu0 0.0
    %123 = vmatpush1.msra.mxu0 0.0
    %124 = vmatprep.subr.mxu0 0.0
    %125 = vmatpush1.msra.mxu0 0.0
    %126 = vmatprep.subr.mxu0 0.0
    %127 = vmatpush1.msra.mxu0 0.0
    %128 = vmatprep.subr.mxu0 0.0
    %129 = vmatpush1.msra.mxu0 0.0
    %130 = vmatprep.subr.mxu0 0.0
    %131 = vmatpush1.msra.mxu0 0.0
    %132 = vmatprep.subr.mxu0 0.0
    %133 = vmatpush1.msra.mxu0 0.0
    %134 = vmatprep.subr.mxu0 0.0
    %135 = vmatpush1.msra.mxu0 0.0
    %136 = vmatprep.subr.mxu0 0.0
    %137 = vmatpush1.msra.mxu0 0.0
    %138 = vmatprep.subr.mxu0 0.0
    %139 = vmatpush1.msra.mxu0 0.0
    %140 = vmatprep.subr.mxu0 0.0
    %141 = vmatpush1.msra.mxu0 0.0
    %142 = vmatprep.subr.mxu0 0.0
    %143 = vmatpush1.msra.mxu0 0.0
    %144 = vmatprep.subr.mxu0 0.0
    %145 = vmatpush1.msra.mxu0 0.0
    %146 = vmatprep.subr.mxu0 0.0
    %147 = vmatpush1.msra.mxu0 0.0
    %148 = vmatprep.subr.mxu0 0.0
    %149 = vmatpush1.msra.mxu0 0.0
    %150 = vmatprep.subr.mxu0 0.0
    %151 = vmatpush1.msra.mxu0 0.0
    %152 = vmatprep.subr.mxu0 0.0
    %153 = vmatpush1.msra.mxu0 %v114
    %154 = vmatprep.subr.mxu0 0.0
    %155 = vmatpush2.msra.mxu0 0.0
    %156 = vmatprep.subr.mxu0 0.0
    %157 = vmatpush2.msra.mxu0 0.0
    %158 = vmatprep.subr.mxu0 0.0
    %159 = vmatpush2.msra.mxu0 0.0
    %160 = vmatprep.subr.mxu0 0.0
    %161 = vmatpush2.msra.mxu0 0.0
    %162 = vmatprep.subr.mxu0 0.0
    %163 = vmatpush2.msra.mxu0 0.0
    %164 = vmatprep.subr.mxu0 0.0
    %165 = vmatpush2.msra.mxu0 0.0
    %166 = vmatprep.subr.mxu0 0.0
    %167 = vmatpush2.msra.mxu0 0.0
    %168 = vmatprep.subr.mxu0 0.0
    %169 = vmatpush2.msra.mxu0 0.0
    %170 = vmatprep.subr.mxu0 0.0
    %171 = vmatpush2.msra.mxu0 0.0
    %172 = vmatprep.subr.mxu0 0.0
    %173 = vmatpush2.msra.mxu0 0.0
    %174 = vmatprep.subr.mxu0 0.0
    %175 = vmatpush2.msra.mxu0 0.0
    %176 = vmatprep.subr.mxu0 0.0
    %177 = vmatpush2.msra.mxu0 0.0
    %178 = vmatprep.subr.mxu0 0.0
    %179 = vmatpush2.msra.mxu0 0.0
    %180 = vmatprep.subr.mxu0 0.0
    %181 = vmatpush2.msra.mxu0 0.0
    %182 = vmatprep.subr.mxu0 0.0
    %183 = vmatpush2.msra.mxu0 0.0
    %184 = vmatprep.subr.mxu0 0.0
    %185 = vmatpush2.msra.mxu0 0.0
    %186 = vmatprep.mubr.f32.mxu0 0.0
    %187 = vmatmul.mubr.f32.gmra.mxu0 %v117
    %v188 = vpop.f32.mrf.mxu0
    %v189 = vadd.f32 0.0, %v188
    %v190 = vpop.f32.mrf.mxu0
    %191 = vmatprep.mubr.f32.mxu0 0.0
    %192 = vmatmul.mubr.f32.gmra.mxu0 %v120
    %v193 = vpop.f32.mrf.mxu0
    %v194 = vadd.f32 0.0, %v193
    %v195 = vpop.f32.mrf.mxu0
    %196 = vdwg.mxu0
    %v197 = vld [vmem:[#allocation2] sm:$0xff]
    %198 = vmatprep.subr.mxu0 0.0
    %199 = vmatpush1.msra.mxu0 0.0
    %200 = vmatprep.subr.mxu0 0.0
    %201 = vmatpush1.msra.mxu0 0.0
    %202 = vmatprep.subr.mxu0 0.0
    %203 = vmatpush1.msra.mxu0 0.0
    %204 = vmatprep.subr.mxu0 0.0
    %205 = vmatpush1.msra.mxu0 0.0
    %206 = vmatprep.subr.mxu0 0.0
    %207 = vmatpush1.msra.mxu0 0.0
    %208 = vmatprep.subr.mxu0 0.0
    %209 = vmatpush1.msra.mxu0 0.0
    %210 = vmatprep.subr.mxu0 0.0
    %211 = vmatpush1.msra.mxu0 0.0
    %212 = vmatprep.subr.mxu0 0.0
    %213 = vmatpush1.msra.mxu0 0.0
    %214 = vmatprep.subr.mxu0 0.0
    %215 = vmatpush1.msra.mxu0 0.0
    %216 = vmatprep.subr.mxu0 0.0
    %217 = vmatpush1.msra.mxu0 0.0
    %218 = vmatprep.subr.mxu0 0.0
    %219 = vmatpush1.msra.mxu0 0.0
    %220 = vmatprep.subr.mxu0 0.0
    %221 = vmatpush1.msra.mxu0 0.0
    %222 = vmatprep.subr.mxu0 0.0
    %223 = vmatpush1.msra.mxu0 0.0
    %224 = vmatprep.subr.mxu0 0.0
    %225 = vmatpush1.msra.mxu0 0.0
    %226 = vmatprep.subr.mxu0 0.0
    %227 = vmatpush1.msra.mxu0 0.0
    %228 = vmatprep.subr.mxu0 0.0
    %229 = vmatpush1.msra.mxu0 %v197
    %230 = vmatprep.subr.mxu0 0.0
    %231 = vmatpush2.msra.mxu0 0.0
    %232 = vmatprep.subr.mxu0 0.0
    %233 = vmatpush2.msra.mxu0 0.0
    %234 = vmatprep.subr.mxu0 0.0
    %235 = vmatpush2.msra.mxu0 0.0
    %236 = vmatprep.subr.mxu0 0.0
    %237 = vmatpush2.msra.mxu0 0.0
    %238 = vmatprep.subr.mxu0 0.0
    %239 = vmatpush2.msra.mxu0 0.0
    %240 = vmatprep.subr.mxu0 0.0
    %241 = vmatpush2.msra.mxu0 0.0
    %242 = vmatprep.subr.mxu0 0.0
    %243 = vmatpush2.msra.mxu0 0.0
    %244 = vmatprep.subr.mxu0 0.0
    %245 = vmatpush2.msra.mxu0 0.0
    %246 = vmatprep.subr.mxu0 0.0
    %247 = vmatpush2.msra.mxu0 0.0
    %248 = vmatprep.subr.mxu0 0.0
    %249 = vmatpush2.msra.mxu0 0.0
    %250 = vmatprep.subr.mxu0 0.0
    %251 = vmatpush2.msra.mxu0 0.0
    %252 = vmatprep.subr.mxu0 0.0
    %253 = vmatpush2.msra.mxu0 0.0
    %254 = vmatprep.subr.mxu0 0.0
    %255 = vmatpush2.msra.mxu0 0.0
    %256 = vmatprep.subr.mxu0 0.0
    %257 = vmatpush2.msra.mxu0 0.0
    %258 = vmatprep.subr.mxu0 0.0
    %259 = vmatpush2.msra.mxu0 0.0
    %260 = vmatprep.subr.mxu0 0.0
    %261 = vmatpush2.msra.mxu0 0.0
    %262 = vmatprep.mubr.f32.mxu0 0.0
    %263 = vmatmul.mubr.f32.gmra.mxu0 %v117
    %v264 = vpop.f32.mrf.mxu0
    %v265 = vadd.f32 0.0, %v264
    %v266 = vpop.f32.mrf.mxu0
    %267 = vmatprep.mubr.f32.mxu0 0.0
    %268 = vmatmul.mubr.f32.gmra.mxu0 %v120
    %v269 = vpop.f32.mrf.mxu0
    %v270 = vadd.f32 0.0, %v269
    %v271 = vpop.f32.mrf.mxu0
    %272 = vdwg.mxu0
    %v274 = vsel %vm115, %v111, 0
    %v277 = vsel %vm115, %v189, 0
    %v280 = vsel %vm115, %v194, 0
    %282 = vmatprep.subr.mxu0 0.0
    %283 = vmatpush1.xpose.msra.mxu0 0.0
    %284 = vmatprep.subr.mxu0 0.0
    %285 = vmatpush1.xpose.msra.mxu0 0.0
    %286 = vmatprep.subr.mxu0 0.0
    %287 = vmatpush1.xpose.msra.mxu0 0.0
    %288 = vmatprep.subr.mxu0 0.0
    %289 = vmatpush1.xpose.msra.mxu0 0.0
    %290 = vmatprep.subr.mxu0 0.0
    %291 = vmatpush1.xpose.msra.mxu0 0.0
    %292 = vmatprep.subr.mxu0 0.0
    %293 = vmatpush1.xpose.msra.mxu0 0.0
    %294 = vmatprep.subr.mxu0 0.0
    %295 = vmatpush1.xpose.msra.mxu0 0.0
    %296 = vmatprep.subr.mxu0 0.0
    %297 = vmatpush1.xpose.msra.mxu0 0.0
    %298 = vmatprep.subr.mxu0 0.0
    %299 = vmatpush1.xpose.msra.mxu0 0.0
    %300 = vmatprep.subr.mxu0 0.0
    %301 = vmatpush1.xpose.msra.mxu0 0.0
    %302 = vmatprep.subr.mxu0 0.0
    %303 = vmatpush1.xpose.msra.mxu0 0.0
    %304 = vmatprep.subr.mxu0 0.0
    %305 = vmatpush1.xpose.msra.mxu0 0.0
    %306 = vmatprep.subr.mxu0 0.0
    %307 = vmatpush1.xpose.msra.mxu0 0.0
    %308 = vmatprep.subr.mxu0 0.0
    %309 = vmatpush1.xpose.msra.mxu0 0.0
    %310 = vmatprep.subr.mxu0 0.0
    %311 = vmatpush1.xpose.msra.mxu0 %v280
    %312 = vmatprep.subr.mxu0 0.0
    %313 = vmatpush1.xpose.msra.mxu0 %v277
    %314 = vmatprep.subr.mxu0 0.0
    %315 = vmatpush2.xpose.msra.mxu0 0.0
    %316 = vmatprep.subr.mxu0 0.0
    %317 = vmatpush2.xpose.msra.mxu0 0.0
    %318 = vmatprep.subr.mxu0 0.0
    %319 = vmatpush2.xpose.msra.mxu0 0.0
    %320 = vmatprep.subr.mxu0 0.0
    %321 = vmatpush2.xpose.msra.mxu0 0.0
    %322 = vmatprep.subr.mxu0 0.0
    %323 = vmatpush2.xpose.msra.mxu0 0.0
    %324 = vmatprep.subr.mxu0 0.0
    %325 = vmatpush2.xpose.msra.mxu0 0.0
    %326 = vmatprep.subr.mxu0 0.0
    %327 = vmatpush2.xpose.msra.mxu0 0.0
    %328 = vmatprep.subr.mxu0 0.0
    %329 = vmatpush2.xpose.msra.mxu0 0.0
    %330 = vmatprep.subr.mxu0 0.0
    %331 = vmatpush2.xpose.msra.mxu0 0.0
    %332 = vmatprep.subr.mxu0 0.0
    %333 = vmatpush2.xpose.msra.mxu0 0.0
    %334 = vmatprep.subr.mxu0 0.0
    %335 = vmatpush2.xpose.msra.mxu0 0.0
    %336 = vmatprep.subr.mxu0 0.0
    %337 = vmatpush2.xpose.msra.mxu0 0.0
    %338 = vmatprep.subr.mxu0 0.0
    %339 = vmatpush2.xpose.msra.mxu0 0.0
    %340 = vmatprep.subr.mxu0 0.0
    %341 = vmatpush2.xpose.msra.mxu0 0.0
    %342 = vmatprep.subr.mxu0 0.0
    %343 = vmatpush2.xpose.msra.mxu0 0.0
    %344 = vmatprep.subr.mxu0 0.0
    %345 = vmatpush2.xpose.msra.mxu0 0.0
    %346 = vmatprep.mubr.f32.mxu0 0.0
    %347 = vmatmul.mubr.f32.gmra.mxu0 %v274
    %v348 = vpop.f32.mrf.mxu0
    %v349 = vadd.f32 0.0, %v348
    %v350 = vpop.f32.mrf.mxu0
    %351 = vdwg.mxu0
    %v352 = vmul.f32 %v349, 0.35355338
    %vm353 = vcmask 74752
    %v354 = vsel %vm353, %v352, -inf
    %355 = vmax.xlane.f32.xlu0 %v354
    %v356 = vpop.xlane.xlu0 %355
    %v357 = vsub.f32 %v352, %v356
    %v358 = vmul.f32 %v357, 1.442695
    %v359 = vpow.pop %v358
    %v360 = vsel %vm353, %v359, 0.0
    %361 = vadd.xlane.f32.xlu0 %v360
    %v362 = vpop.xlane.xlu0 %361
    %v363 = vrcp.pop %v362
    %v364 = vmul.f32 %v359, %v363
    %vm365 = vcmask 80896
    %v367 = vsel %vm365, %v364, 0
    %vm369 = vcmask 1041408
    %v371 = vsel %vm369, %v270, 0
    %373 = vmatprep.subr.mxu0 0.0
    %374 = vmatpush1.msra.mxu0 0.0
    %375 = vmatprep.subr.mxu0 0.0
    %376 = vmatpush1.msra.mxu0 0.0
    %377 = vmatprep.subr.mxu0 0.0
    %378 = vmatpush1.msra.mxu0 0.0
    %379 = vmatprep.subr.mxu0 0.0
    %380 = vmatpush1.msra.mxu0 0.0
    %381 = vmatprep.subr.mxu0 0.0
    %382 = vmatpush1.msra.mxu0 0.0
    %383 = vmatprep.subr.mxu0 0.0
    %384 = vmatpush1.msra.mxu0 0.0
    %385 = vmatprep.subr.mxu0 0.0
    %386 = vmatpush1.msra.mxu0 0.0
    %387 = vmatprep.subr.mxu0 0.0
    %388 = vmatpush1.msra.mxu0 0.0
    %389 = vmatprep.subr.mxu0 0.0
    %390 = vmatpush1.msra.mxu0 0.0
    %391 = vmatprep.subr.mxu0 0.0
    %392 = vmatpush1.msra.mxu0 0.0
    %393 = vmatprep.subr.mxu0 0.0
    %394 = vmatpush1.msra.mxu0 0.0
    %395 = vmatprep.subr.mxu0 0.0
    %396 = vmatpush1.msra.mxu0 0.0
    %397 = vmatprep.subr.mxu0 0.0
    %398 = vmatpush1.msra.mxu0 0.0
    %399 = vmatprep.subr.mxu0 0.0
    %400 = vmatpush1.msra.mxu0 0.0
    %401 = vmatprep.subr.mxu0 0.0
    %402 = vmatpush1.msra.mxu0 %v371
    %403 = vmatprep.subr.mxu0 0.0
    %404 = vmatpush1.msra.mxu0 %v265
    %405 = vmatprep.subr.mxu0 0.0
    %406 = vmatpush2.msra.mxu0 0.0
    %407 = vmatprep.subr.mxu0 0.0
    %408 = vmatpush2.msra.mxu0 0.0
    %409 = vmatprep.subr.mxu0 0.0
    %410 = vmatpush2.msra.mxu0 0.0
    %411 = vmatprep.subr.mxu0 0.0
    %412 = vmatpush2.msra.mxu0 0.0
    %413 = vmatprep.subr.mxu0 0.0
    %414 = vmatpush2.msra.mxu0 0.0
    %415 = vmatprep.subr.mxu0 0.0
    %416 = vmatpush2.msra.mxu0 0.0
    %417 = vmatprep.subr.mxu0 0.0
    %418 = vmatpush2.msra.mxu0 0.0
    %419 = vmatprep.subr.mxu0 0.0
    %420 = vmatpush2.msra.mxu0 0.0
    %421 = vmatprep.subr.mxu0 0.0
    %422 = vmatpush2.msra.mxu0 0.0
    %423 = vmatprep.subr.mxu0 0.0
    %424 = vmatpush2.msra.mxu0 0.0
    %425 = vmatprep.subr.mxu0 0.0
    %426 = vmatpush2.msra.mxu0 0.0
    %427 = vmatprep.subr.mxu0 0.0
    %428 = vmatpush2.msra.mxu0 0.0
    %429 = vmatprep.subr.mxu0 0.0
    %430 = vmatpush2.msra.mxu0 0.0
    %431 = vmatprep.subr.mxu0 0.0
    %432 = vmatpush2.msra.mxu0 0.0
    %433 = vmatprep.subr.mxu0 0.0
    %434 = vmatpush2.msra.mxu0 0.0
    %435 = vmatprep.subr.mxu0 0.0
    %436 = vmatpush2.msra.mxu0 0.0
    %437 = vmatprep.mubr.f32.mxu0 0.0
    %438 = vmatmul.mubr.f32.gmra.mxu0 %v367
    %v439 = vpop.f32.mrf.mxu0
    %v440 = vadd.f32 0.0, %v439
    %v441 = vpop.f32.mrf.mxu0
    %442 = vdwg.mxu0
    %443 = vrot.lane.b32.xlu0 %v111, 120
    %v444 = vpop.permute.xlu0 %443
    %445 = vrot.lane.b32.xlu0 %v189, 120
    %v446 = vpop.permute.xlu0 %445
    %447 = vrot.lane.b32.xlu0 %v194, 120
    %v448 = vpop.permute.xlu0 %447
    %v449 = vsel %vm115, %v444, 0
    %v451 = vsel %vm115, %v446, 0
    %v453 = vsel %vm115, %v448, 0
    %455 = vmatprep.subr.mxu0 0.0
    %456 = vmatpush1.xpose.msra.mxu0 0.0
    %457 = vmatprep.subr.mxu0 0.0
    %458 = vmatpush1.xpose.msra.mxu0 0.0
    %459 = vmatprep.subr.mxu0 0.0
    %460 = vmatpush1.xpose.msra.mxu0 0.0
    %461 = vmatprep.subr.mxu0 0.0
    %462 = vmatpush1.xpose.msra.mxu0 0.0
    %463 = vmatprep.subr.mxu0 0.0
    %464 = vmatpush1.xpose.msra.mxu0 0.0
    %465 = vmatprep.subr.mxu0 0.0
    %466 = vmatpush1.xpose.msra.mxu0 0.0
    %467 = vmatprep.subr.mxu0 0.0
    %468 = vmatpush1.xpose.msra.mxu0 0.0
    %469 = vmatprep.subr.mxu0 0.0
    %470 = vmatpush1.xpose.msra.mxu0 0.0
    %471 = vmatprep.subr.mxu0 0.0
    %472 = vmatpush1.xpose.msra.mxu0 0.0
    %473 = vmatprep.subr.mxu0 0.0
    %474 = vmatpush1.xpose.msra.mxu0 0.0
    %475 = vmatprep.subr.mxu0 0.0
    %476 = vmatpush1.xpose.msra.mxu0 0.0
    %477 = vmatprep.subr.mxu0 0.0
    %478 = vmatpush1.xpose.msra.mxu0 0.0
    %479 = vmatprep.subr.mxu0 0.0
    %480 = vmatpush1.xpose.msra.mxu0 0.0
    %481 = vmatprep.subr.mxu0 0.0
    %482 = vmatpush1.xpose.msra.mxu0 0.0
    %483 = vmatprep.subr.mxu0 0.0
    %484 = vmatpush1.xpose.msra.mxu0 %v453
    %485 = vmatprep.subr.mxu0 0.0
    %486 = vmatpush1.xpose.msra.mxu0 %v451
    %487 = vmatprep.subr.mxu0 0.0
    %488 = vmatpush2.xpose.msra.mxu0 0.0
    %489 = vmatprep.subr.mxu0 0.0
    %490 = vmatpush2.xpose.msra.mxu0 0.0
    %491 = vmatprep.subr.mxu0 0.0
    %492 = vmatpush2.xpose.msra.mxu0 0.0
    %493 = vmatprep.subr.mxu0 0.0
    %494 = vmatpush2.xpose.msra.mxu0 0.0
    %495 = vmatprep.subr.mxu0 0.0
    %496 = vmatpush2.xpose.msra.mxu0 0.0
    %497 = vmatprep.subr.mxu0 0.0
    %498 = vmatpush2.xpose.msra.mxu0 0.0
    %499 = vmatprep.subr.mxu0 0.0
    %500 = vmatpush2.xpose.msra.mxu0 0.0
    %501 = vmatprep.subr.mxu0 0.0
    %502 = vmatpush2.xpose.msra.mxu0 0.0
    %503 = vmatprep.subr.mxu0 0.0
    %504 = vmatpush2.xpose.msra.mxu0 0.0
    %505 = vmatprep.subr.mxu0 0.0
    %506 = vmatpush2.xpose.msra.mxu0 0.0
    %507 = vmatprep.subr.mxu0 0.0
    %508 = vmatpush2.xpose.msra.mxu0 0.0
    %509 = vmatprep.subr.mxu0 0.0
    %510 = vmatpush2.xpose.msra.mxu0 0.0
    %511 = vmatprep.subr.mxu0 0.0
    %512 = vmatpush2.xpose.msra.mxu0 0.0
    %513 = vmatprep.subr.mxu0 0.0
    %514 = vmatpush2.xpose.msra.mxu0 0.0
    %515 = vmatprep.subr.mxu0 0.0
    %516 = vmatpush2.xpose.msra.mxu0 0.0
    %517 = vmatprep.subr.mxu0 0.0
    %518 = vmatpush2.xpose.msra.mxu0 0.0
    %519 = vmatprep.mubr.f32.mxu0 0.0
    %520 = vmatmul.mubr.f32.gmra.mxu0 %v449
    %v521 = vpop.f32.mrf.mxu0
    %v522 = vadd.f32 0.0, %v521
    %v523 = vpop.f32.mrf.mxu0
    %524 = vdwg.mxu0
    %v525 = vmul.f32 %v522, 0.35355338
    %v526 = vsel %vm353, %v525, -inf
    %527 = vmax.xlane.f32.xlu0 %v526
    %v528 = vpop.xlane.xlu0 %527
    %v529 = vsub.f32 %v525, %v528
    %v530 = vmul.f32 %v529, 1.442695
    %v531 = vpow.pop %v530
    %v532 = vsel %vm353, %v531, 0.0
    %533 = vadd.xlane.f32.xlu0 %v532
    %v534 = vpop.xlane.xlu0 %533
    %v535 = vrcp.pop %v534
    %v536 = vmul.f32 %v531, %v535
    %538 = vrot.lane.b32.xlu0 %v265, 120
    %v539 = vpop.permute.xlu0 %538
    %540 = vrot.lane.b32.xlu0 %v270, 120
    %v541 = vpop.permute.xlu0 %540
    %v544 = vsel %vm365, %v536, 0
    %v546 = vsel %vm369, %v541, 0
    %548 = vmatprep.subr.mxu0 0.0
    %549 = vmatpush1.msra.mxu0 0.0
    %550 = vmatprep.subr.mxu0 0.0
    %551 = vmatpush1.msra.mxu0 0.0
    %552 = vmatprep.subr.mxu0 0.0
    %553 = vmatpush1.msra.mxu0 0.0
    %554 = vmatprep.subr.mxu0 0.0
    %555 = vmatpush1.msra.mxu0 0.0
    %556 = vmatprep.subr.mxu0 0.0
    %557 = vmatpush1.msra.mxu0 0.0
    %558 = vmatprep.subr.mxu0 0.0
    %559 = vmatpush1.msra.mxu0 0.0
    %560 = vmatprep.subr.mxu0 0.0
    %561 = vmatpush1.msra.mxu0 0.0
    %562 = vmatprep.subr.mxu0 0.0
    %563 = vmatpush1.msra.mxu0 0.0
    %564 = vmatprep.subr.mxu0 0.0
    %565 = vmatpush1.msra.mxu0 0.0
    %566 = vmatprep.subr.mxu0 0.0
    %567 = vmatpush1.msra.mxu0 0.0
    %568 = vmatprep.subr.mxu0 0.0
    %569 = vmatpush1.msra.mxu0 0.0
    %570 = vmatprep.subr.mxu0 0.0
    %571 = vmatpush1.msra.mxu0 0.0
    %572 = vmatprep.subr.mxu0 0.0
    %573 = vmatpush1.msra.mxu0 0.0
    %574 = vmatprep.subr.mxu0 0.0
    %575 = vmatpush1.msra.mxu0 0.0
    %576 = vmatprep.subr.mxu0 0.0
    %577 = vmatpush1.msra.mxu0 %v546
    %578 = vmatprep.subr.mxu0 0.0
    %579 = vmatpush1.msra.mxu0 %v539
    %580 = vmatprep.subr.mxu0 0.0
    %581 = vmatpush2.msra.mxu0 0.0
    %582 = vmatprep.subr.mxu0 0.0
    %583 = vmatpush2.msra.mxu0 0.0
    %584 = vmatprep.subr.mxu0 0.0
    %585 = vmatpush2.msra.mxu0 0.0
    %586 = vmatprep.subr.mxu0 0.0
    %587 = vmatpush2.msra.mxu0 0.0
    %588 = vmatprep.subr.mxu0 0.0
    %589 = vmatpush2.msra.mxu0 0.0
    %590 = vmatprep.subr.mxu0 0.0
    %591 = vmatpush2.msra.mxu0 0.0
    %592 = vmatprep.subr.mxu0 0.0
    %593 = vmatpush2.msra.mxu0 0.0
    %594 = vmatprep.subr.mxu0 0.0
    %595 = vmatpush2.msra.mxu0 0.0
    %596 = vmatprep.subr.mxu0 0.0
    %597 = vmatpush2.msra.mxu0 0.0
    %598 = vmatprep.subr.mxu0 0.0
    %599 = vmatpush2.msra.mxu0 0.0
    %600 = vmatprep.subr.mxu0 0.0
    %601 = vmatpush2.msra.mxu0 0.0
    %602 = vmatprep.subr.mxu0 0.0
    %603 = vmatpush2.msra.mxu0 0.0
    %604 = vmatprep.subr.mxu0 0.0
    %605 = vmatpush2.msra.mxu0 0.0
    %606 = vmatprep.subr.mxu0 0.0
    %607 = vmatpush2.msra.mxu0 0.0
    %608 = vmatprep.subr.mxu0 0.0
    %609 = vmatpush2.msra.mxu0 0.0
    %610 = vmatprep.subr.mxu0 0.0
    %611 = vmatpush2.msra.mxu0 0.0
    %612 = vmatprep.mubr.f32.mxu0 0.0
    %613 = vmatmul.mubr.f32.gmra.mxu0 %v544
    %v614 = vpop.f32.mrf.mxu0
    %v615 = vadd.f32 0.0, %v614
    %v616 = vpop.f32.mrf.mxu0
    %617 = vdwg.mxu0
    %618 = vrot.lane.b32.xlu0 %v111, 112
    %v619 = vpop.permute.xlu0 %618
    %620 = vrot.lane.b32.xlu0 %v189, 112
    %v621 = vpop.permute.xlu0 %620
    %622 = vrot.lane.b32.xlu0 %v194, 112
    %v623 = vpop.permute.xlu0 %622
    %v624 = vsel %vm115, %v619, 0
    %v626 = vsel %vm115, %v621, 0
    %v628 = vsel %vm115, %v623, 0
    %630 = vmatprep.subr.mxu0 0.0
    %631 = vmatpush1.xpose.msra.mxu0 0.0
    %632 = vmatprep.subr.mxu0 0.0
    %633 = vmatpush1.xpose.msra.mxu0 0.0
    %634 = vmatprep.subr.mxu0 0.0
    %635 = vmatpush1.xpose.msra.mxu0 0.0
    %636 = vmatprep.subr.mxu0 0.0
    %637 = vmatpush1.xpose.msra.mxu0 0.0
    %638 = vmatprep.subr.mxu0 0.0
    %639 = vmatpush1.xpose.msra.mxu0 0.0
    %640 = vmatprep.subr.mxu0 0.0
    %641 = vmatpush1.xpose.msra.mxu0 0.0
    %642 = vmatprep.subr.mxu0 0.0
    %643 = vmatpush1.xpose.msra.mxu0 0.0
    %644 = vmatprep.subr.mxu0 0.0
    %645 = vmatpush1.xpose.msra.mxu0 0.0
    %646 = vmatprep.subr.mxu0 0.0
    %647 = vmatpush1.xpose.msra.mxu0 0.0
    %648 = vmatprep.subr.mxu0 0.0
    %649 = vmatpush1.xpose.msra.mxu0 0.0
    %650 = vmatprep.subr.mxu0 0.0
    %651 = vmatpush1.xpose.msra.mxu0 0.0
    %652 = vmatprep.subr.mxu0 0.0
    %653 = vmatpush1.xpose.msra.mxu0 0.0
    %654 = vmatprep.subr.mxu0 0.0
    %655 = vmatpush1.xpose.msra.mxu0 0.0
    %656 = vmatprep.subr.mxu0 0.0
    %657 = vmatpush1.xpose.msra.mxu0 0.0
    %658 = vmatprep.subr.mxu0 0.0
    %659 = vmatpush1.xpose.msra.mxu0 %v628
    %660 = vmatprep.subr.mxu0 0.0
    %661 = vmatpush1.xpose.msra.mxu0 %v626
    %662 = vmatprep.subr.mxu0 0.0
    %663 = vmatpush2.xpose.msra.mxu0 0.0
    %664 = vmatprep.subr.mxu0 0.0
    %665 = vmatpush2.xpose.msra.mxu0 0.0
    %666 = vmatprep.subr.mxu0 0.0
    %667 = vmatpush2.xpose.msra.mxu0 0.0
    %668 = vmatprep.subr.mxu0 0.0
    %669 = vmatpush2.xpose.msra.mxu0 0.0
    %670 = vmatprep.subr.mxu0 0.0
    %671 = vmatpush2.xpose.msra.mxu0 0.0
    %672 = vmatprep.subr.mxu0 0.0
    %673 = vmatpush2.xpose.msra.mxu0 0.0
    %674 = vmatprep.subr.mxu0 0.0
    %675 = vmatpush2.xpose.msra.mxu0 0.0
    %676 = vmatprep.subr.mxu0 0.0
    %677 = vmatpush2.xpose.msra.mxu0 0.0
    %678 = vmatprep.subr.mxu0 0.0
    %679 = vmatpush2.xpose.msra.mxu0 0.0
    %680 = vmatprep.subr.mxu0 0.0
    %681 = vmatpush2.xpose.msra.mxu0 0.0
    %682 = vmatprep.subr.mxu0 0.0
    %683 = vmatpush2.xpose.msra.mxu0 0.0
    %684 = vmatprep.subr.mxu0 0.0
    %685 = vmatpush2.xpose.msra.mxu0 0.0
    %686 = vmatprep.subr.mxu0 0.0
    %687 = vmatpush2.xpose.msra.mxu0 0.0
    %688 = vmatprep.subr.mxu0 0.0
    %689 = vmatpush2.xpose.msra.mxu0 0.0
    %690 = vmatprep.subr.mxu0 0.0
    %691 = vmatpush2.xpose.msra.mxu0 0.0
    %692 = vmatprep.subr.mxu0 0.0
    %693 = vmatpush2.xpose.msra.mxu0 0.0
    %694 = vmatprep.mubr.f32.mxu0 0.0
    %695 = vmatmul.mubr.f32.gmra.mxu0 %v624
    %v696 = vpop.f32.mrf.mxu0
    %v697 = vadd.f32 0.0, %v696
    %v698 = vpop.f32.mrf.mxu0
    %699 = vdwg.mxu0
    %v700 = vmul.f32 %v697, 0.35355338
    %v701 = vsel %vm353, %v700, -inf
    %702 = vmax.xlane.f32.xlu0 %v701
    %v703 = vpop.xlane.xlu0 %702
    %v704 = vsub.f32 %v700, %v703
    %v705 = vmul.f32 %v704, 1.442695
    %v706 = vpow.pop %v705
    %v707 = vsel %vm353, %v706, 0.0
    %708 = vadd.xlane.f32.xlu0 %v707
    %v709 = vpop.xlane.xlu0 %708
    %v710 = vrcp.pop %v709
    %v711 = vmul.f32 %v706, %v710
    %712 = vrot.lane.b32.xlu0 %v265, 112
    %v713 = vpop.permute.xlu0 %712
    %714 = vrot.lane.b32.xlu0 %v270, 112
    %v715 = vpop.permute.xlu0 %714
    %v718 = vsel %vm365, %v711, 0
    %v720 = vsel %vm369, %v715, 0
    %722 = vmatprep.subr.mxu0 0.0
    %723 = vmatpush1.msra.mxu0 0.0
    %724 = vmatprep.subr.mxu0 0.0
    %725 = vmatpush1.msra.mxu0 0.0
    %726 = vmatprep.subr.mxu0 0.0
    %727 = vmatpush1.msra.mxu0 0.0
    %728 = vmatprep.subr.mxu0 0.0
    %729 = vmatpush1.msra.mxu0 0.0
    %730 = vmatprep.subr.mxu0 0.0
    %731 = vmatpush1.msra.mxu0 0.0
    %732 = vmatprep.subr.mxu0 0.0
    %733 = vmatpush1.msra.mxu0 0.0
    %734 = vmatprep.subr.mxu0 0.0
    %735 = vmatpush1.msra.mxu0 0.0
    %736 = vmatprep.subr.mxu0 0.0
    %737 = vmatpush1.msra.mxu0 0.0
    %738 = vmatprep.subr.mxu0 0.0
    %739 = vmatpush1.msra.mxu0 0.0
    %740 = vmatprep.subr.mxu0 0.0
    %741 = vmatpush1.msra.mxu0 0.0
    %742 = vmatprep.subr.mxu0 0.0
    %743 = vmatpush1.msra.mxu0 0.0
    %744 = vmatprep.subr.mxu0 0.0
    %745 = vmatpush1.msra.mxu0 0.0
    %746 = vmatprep.subr.mxu0 0.0
    %747 = vmatpush1.msra.mxu0 0.0
    %748 = vmatprep.subr.mxu0 0.0
    %749 = vmatpush1.msra.mxu0 0.0
    %750 = vmatprep.subr.mxu0 0.0
    %751 = vmatpush1.msra.mxu0 %v720
    %752 = vmatprep.subr.mxu0 0.0
    %753 = vmatpush1.msra.mxu0 %v713
    %754 = vmatprep.subr.mxu0 0.0
    %755 = vmatpush2.msra.mxu0 0.0
    %756 = vmatprep.subr.mxu0 0.0
    %757 = vmatpush2.msra.mxu0 0.0
    %758 = vmatprep.subr.mxu0 0.0
    %759 = vmatpush2.msra.mxu0 0.0
    %760 = vmatprep.subr.mxu0 0.0
    %761 = vmatpush2.msra.mxu0 0.0
    %762 = vmatprep.subr.mxu0 0.0
    %763 = vmatpush2.msra.mxu0 0.0
    %764 = vmatprep.subr.mxu0 0.0
    %765 = vmatpush2.msra.mxu0 0.0
    %766 = vmatprep.subr.mxu0 0.0
    %767 = vmatpush2.msra.mxu0 0.0
    %768 = vmatprep.subr.mxu0 0.0
    %769 = vmatpush2.msra.mxu0 0.0
    %770 = vmatprep.subr.mxu0 0.0
    %771 = vmatpush2.msra.mxu0 0.0
    %772 = vmatprep.subr.mxu0 0.0
    %773 = vmatpush2.msra.mxu0 0.0
    %774 = vmatprep.subr.mxu0 0.0
    %775 = vmatpush2.msra.mxu0 0.0
    %776 = vmatprep.subr.mxu0 0.0
    %777 = vmatpush2.msra.mxu0 0.0
    %778 = vmatprep.subr.mxu0 0.0
    %779 = vmatpush2.msra.mxu0 0.0
    %780 = vmatprep.subr.mxu0 0.0
    %781 = vmatpush2.msra.mxu0 0.0
    %782 = vmatprep.subr.mxu0 0.0
    %783 = vmatpush2.msra.mxu0 0.0
    %784 = vmatprep.subr.mxu0 0.0
    %785 = vmatpush2.msra.mxu0 0.0
    %786 = vmatprep.mubr.f32.mxu0 0.0
    %787 = vmatmul.mubr.f32.gmra.mxu0 %v718
    %v788 = vpop.f32.mrf.mxu0
    %v789 = vadd.f32 0.0, %v788
    %v790 = vpop.f32.mrf.mxu0
    %791 = vdwg.mxu0
    %792 = vrot.lane.b32.xlu0 %v111, 104
    %v793 = vpop.permute.xlu0 %792
    %794 = vrot.lane.b32.xlu0 %v189, 104
    %v795 = vpop.permute.xlu0 %794
    %796 = vrot.lane.b32.xlu0 %v194, 104
    %v797 = vpop.permute.xlu0 %796
    %v798 = vsel %vm115, %v793, 0
    %v800 = vsel %vm115, %v795, 0
    %v802 = vsel %vm115, %v797, 0
    %804 = vmatprep.subr.mxu0 0.0
    %805 = vmatpush1.xpose.msra.mxu0 0.0
    %806 = vmatprep.subr.mxu0 0.0
    %807 = vmatpush1.xpose.msra.mxu0 0.0
    %808 = vmatprep.subr.mxu0 0.0
    %809 = vmatpush1.xpose.msra.mxu0 0.0
    %810 = vmatprep.subr.mxu0 0.0
    %811 = vmatpush1.xpose.msra.mxu0 0.0
    %812 = vmatprep.subr.mxu0 0.0
    %813 = vmatpush1.xpose.msra.mxu0 0.0
    %814 = vmatprep.subr.mxu0 0.0
    %815 = vmatpush1.xpose.msra.mxu0 0.0
    %816 = vmatprep.subr.mxu0 0.0
    %817 = vmatpush1.xpose.msra.mxu0 0.0
    %818 = vmatprep.subr.mxu0 0.0
    %819 = vmatpush1.xpose.msra.mxu0 0.0
    %820 = vmatprep.subr.mxu0 0.0
    %821 = vmatpush1.xpose.msra.mxu0 0.0
    %822 = vmatprep.subr.mxu0 0.0
    %823 = vmatpush1.xpose.msra.mxu0 0.0
    %824 = vmatprep.subr.mxu0 0.0
    %825 = vmatpush1.xpose.msra.mxu0 0.0
    %826 = vmatprep.subr.mxu0 0.0
    %827 = vmatpush1.xpose.msra.mxu0 0.0
    %828 = vmatprep.subr.mxu0 0.0
    %829 = vmatpush1.xpose.msra.mxu0 0.0
    %830 = vmatprep.subr.mxu0 0.0
    %831 = vmatpush1.xpose.msra.mxu0 0.0
    %832 = vmatprep.subr.mxu0 0.0
    %833 = vmatpush1.xpose.msra.mxu0 %v802
    %834 = vmatprep.subr.mxu0 0.0
    %835 = vmatpush1.xpose.msra.mxu0 %v800
    %836 = vmatprep.subr.mxu0 0.0
    %837 = vmatpush2.xpose.msra.mxu0 0.0
    %838 = vmatprep.subr.mxu0 0.0
    %839 = vmatpush2.xpose.msra.mxu0 0.0
    %840 = vmatprep.subr.mxu0 0.0
    %841 = vmatpush2.xpose.msra.mxu0 0.0
    %842 = vmatprep.subr.mxu0 0.0
    %843 = vmatpush2.xpose.msra.mxu0 0.0
    %844 = vmatprep.subr.mxu0 0.0
    %845 = vmatpush2.xpose.msra.mxu0 0.0
    %846 = vmatprep.subr.mxu0 0.0
    %847 = vmatpush2.xpose.msra.mxu0 0.0
    %848 = vmatprep.subr.mxu0 0.0
    %849 = vmatpush2.xpose.msra.mxu0 0.0
    %850 = vmatprep.subr.mxu0 0.0
    %851 = vmatpush2.xpose.msra.mxu0 0.0
    %852 = vmatprep.subr.mxu0 0.0
    %853 = vmatpush2.xpose.msra.mxu0 0.0
    %854 = vmatprep.subr.mxu0 0.0
    %855 = vmatpush2.xpose.msra.mxu0 0.0
    %856 = vmatprep.subr.mxu0 0.0
    %857 = vmatpush2.xpose.msra.mxu0 0.0
    %858 = vmatprep.subr.mxu0 0.0
    %859 = vmatpush2.xpose.msra.mxu0 0.0
    %860 = vmatprep.subr.mxu0 0.0
    %861 = vmatpush2.xpose.msra.mxu0 0.0
    %862 = vmatprep.subr.mxu0 0.0
    %863 = vmatpush2.xpose.msra.mxu0 0.0
    %864 = vmatprep.subr.mxu0 0.0
    %865 = vmatpush2.xpose.msra.mxu0 0.0
    %866 = vmatprep.subr.mxu0 0.0
    %867 = vmatpush2.xpose.msra.mxu0 0.0
    %868 = vmatprep.mubr.f32.mxu0 0.0
    %869 = vmatmul.mubr.f32.gmra.mxu0 %v798
    %v870 = vpop.f32.mrf.mxu0
    %v871 = vadd.f32 0.0, %v870
    %v872 = vpop.f32.mrf.mxu0
    %873 = vdwg.mxu0
    %v874 = vmul.f32 %v871, 0.35355338
    %v875 = vsel %vm353, %v874, -inf
    %876 = vmax.xlane.f32.xlu0 %v875
    %v877 = vpop.xlane.xlu0 %876
    %v878 = vsub.f32 %v874, %v877
    %v879 = vmul.f32 %v878, 1.442695
    %v880 = vpow.pop %v879
    %v881 = vsel %vm353, %v880, 0.0
    %882 = vadd.xlane.f32.xlu0 %v881
    %v883 = vpop.xlane.xlu0 %882
    %v884 = vrcp.pop %v883
    %v885 = vmul.f32 %v880, %v884
    %886 = vrot.lane.b32.xlu0 %v265, 104
    %v887 = vpop.permute.xlu0 %886
    %888 = vrot.lane.b32.xlu0 %v270, 104
    %v889 = vpop.permute.xlu0 %888
    %v892 = vsel %vm365, %v885, 0
    %v894 = vsel %vm369, %v889, 0
    %896 = vmatprep.subr.mxu0 0.0
    %897 = vmatpush1.msra.mxu0 0.0
    %898 = vmatprep.subr.mxu0 0.0
    %899 = vmatpush1.msra.mxu0 0.0
    %900 = vmatprep.subr.mxu0 0.0
    %901 = vmatpush1.msra.mxu0 0.0
    %902 = vmatprep.subr.mxu0 0.0
    %903 = vmatpush1.msra.mxu0 0.0
    %904 = vmatprep.subr.mxu0 0.0
    %905 = vmatpush1.msra.mxu0 0.0
    %906 = vmatprep.subr.mxu0 0.0
    %907 = vmatpush1.msra.mxu0 0.0
    %908 = vmatprep.subr.mxu0 0.0
    %909 = vmatpush1.msra.mxu0 0.0
    %910 = vmatprep.subr.mxu0 0.0
    %911 = vmatpush1.msra.mxu0 0.0
    %912 = vmatprep.subr.mxu0 0.0
    %913 = vmatpush1.msra.mxu0 0.0
    %914 = vmatprep.subr.mxu0 0.0
    %915 = vmatpush1.msra.mxu0 0.0
    %916 = vmatprep.subr.mxu0 0.0
    %917 = vmatpush1.msra.mxu0 0.0
    %918 = vmatprep.subr.mxu0 0.0
    %919 = vmatpush1.msra.mxu0 0.0
    %920 = vmatprep.subr.mxu0 0.0
    %921 = vmatpush1.msra.mxu0 0.0
    %922 = vmatprep.subr.mxu0 0.0
    %923 = vmatpush1.msra.mxu0 0.0
    %924 = vmatprep.subr.mxu0 0.0
    %925 = vmatpush1.msra.mxu0 %v894
    %926 = vmatprep.subr.mxu0 0.0
    %927 = vmatpush1.msra.mxu0 %v887
    %928 = vmatprep.subr.mxu0 0.0
    %929 = vmatpush2.msra.mxu0 0.0
    %930 = vmatprep.subr.mxu0 0.0
    %931 = vmatpush2.msra.mxu0 0.0
    %932 = vmatprep.subr.mxu0 0.0
    %933 = vmatpush2.msra.mxu0 0.0
    %934 = vmatprep.subr.mxu0 0.0
    %935 = vmatpush2.msra.mxu0 0.0
    %936 = vmatprep.subr.mxu0 0.0
    %937 = vmatpush2.msra.mxu0 0.0
    %938 = vmatprep.subr.mxu0 0.0
    %939 = vmatpush2.msra.mxu0 0.0
    %940 = vmatprep.subr.mxu0 0.0
    %941 = vmatpush2.msra.mxu0 0.0
    %942 = vmatprep.subr.mxu0 0.0
    %943 = vmatpush2.msra.mxu0 0.0
    %944 = vmatprep.subr.mxu0 0.0
    %945 = vmatpush2.msra.mxu0 0.0
    %946 = vmatprep.subr.mxu0 0.0
    %947 = vmatpush2.msra.mxu0 0.0
    %948 = vmatprep.subr.mxu0 0.0
    %949 = vmatpush2.msra.mxu0 0.0
    %950 = vmatprep.subr.mxu0 0.0
    %951 = vmatpush2.msra.mxu0 0.0
    %952 = vmatprep.subr.mxu0 0.0
    %953 = vmatpush2.msra.mxu0 0.0
    %954 = vmatprep.subr.mxu0 0.0
    %955 = vmatpush2.msra.mxu0 0.0
    %956 = vmatprep.subr.mxu0 0.0
    %957 = vmatpush2.msra.mxu0 0.0
    %958 = vmatprep.subr.mxu0 0.0
    %959 = vmatpush2.msra.mxu0 0.0
    %960 = vmatprep.mubr.f32.mxu0 0.0
    %961 = vmatmul.mubr.f32.gmra.mxu0 %v892
    %v962 = vpop.f32.mrf.mxu0
    %v963 = vadd.f32 0.0, %v962
    %v964 = vpop.f32.mrf.mxu0
    %965 = vdwg.mxu0
    %967 = vrot.lane.b32.xlu0 %v615, 8
    %v968 = vpop.permute.xlu0 %967
    %971 = vrot.lane.b32.xlu0 %v789, 16
    %v972 = vpop.permute.xlu0 %971
    %975 = vrot.lane.b32.xlu0 %v963, 24
    %v976 = vpop.permute.xlu0 %975
    %v978 = vsel %vm115, %v440, %v968
    %v979 = vsel %vm40, %v978, %v972
    %vm980 = vcmask 195584
    %v981 = vsel %vm980, %v979, %v976
    %vm982 = vcmask 254976
    %983 = vst.msk [vmem:[#allocation5] sm:$0x3] %vm982, %v981
    // Predicated region
    $region26: #{tpu_custom_call.1} parent=1 // pred_check
      _
    $region27: #{tpu_custom_call.1} parent=1 // pred_check_branch
      %985 = sbr.rel (0) target = $region29
    $region28: #{tpu_custom_call.1} parent=1 // pred_region
      %s987 = ssub.s32 32, 32
      %988 = vsyncadd [#allocation4], %s987
      %s990 = sshll.u32 [#allocation5], 4
      %s991 = int_to_ptr.vmem [resolvable:$true] %s990
      %993 = dma.vmem_to_hbm [thread:$0]  %s991, 32, %s5, [#allocation4]
    $region29: #{tpu_custom_call.1} parent=1 // pred_fallthru
      _
    // Predicated region
    $region30: #{tpu_custom_call.1} parent=1 // pred_check
      _
    $region31: #{tpu_custom_call.1} parent=1 // pred_check_branch
      %995 = sbr.rel (0) target = $region33
    $region32: #{tpu_custom_call.1} parent=1 // pred_region
      %996 = dma.done [#allocation4], 32
    $region33: #{tpu_custom_call.1} parent=1 // pred_fallthru
      _
    %997 = vsyncpa [#allocation3], 1
    %998 = vsyncpa [#allocation4], 1

</llo_original>
